<compile_context>
chip_gen: v5e
topology: v5e:2x2
jax: 0.10.0
libtpu: 0.0.40
codegen_flags: <defaults>
</compile_context>

<pallas_src>
import functools
import math

import jax
import jax.numpy as jnp
from jax import lax
from jax.experimental import pallas as pl
from jax.experimental.pallas import tpu as pltpu

EMBEDDING_DIM = 4
NUM_ACTIONS = 554
NUM_CHANNELS = 256
NUM_RES_BLOCKS = 9
BOARD_H, BOARD_W = 6, 5
BN_EPS = 1e-5
_LANE = 128
_N_CONV_LAYERS = 1 + 2 * NUM_RES_BLOCKS     # conv0 + 2 convs per residual block = 19
_N_HEAD_ROWS = 8                            # pconv (2 ch) + vconv (1 ch), padded to 8
_MASK_ROWS = 16                             # 9 tap masks + 1 valid-column mask, padded
_VALID_ROW = 9


def _round_up(x, m):
    return (x + m - 1) // m * m


# ----------------------------------------------------------------------------
# pltpu.roll convention probe (one tiny kernel, run once, cached).
# Returns +1 if pltpu.roll matches np.roll (out[i] = x[i - shift]), else -1.
# ----------------------------------------------------------------------------
@functools.lru_cache(maxsize=None)
def _roll_sign():
    def kernel(x_ref, o_ref):
        o_ref[...] = pltpu.roll(x_ref[...], shift=1, axis=1)

    x = jnp.broadcast_to(jnp.arange(128, dtype=jnp.float32), (8, 128))
    out = pl.pallas_call(
        kernel,
        out_shape=jax.ShapeDtypeStruct((8, 128), jnp.float32),
        grid=(1,),
        in_specs=[pl.BlockSpec((8, 128), lambda i: (0, 0))],
        out_specs=pl.BlockSpec((8, 128), lambda i: (0, 0)),
    )(x)
    return 1 if abs(float(out[0, 0]) - 127.0) < 0.5 else -1


# ----------------------------------------------------------------------------
# Fused residual-tower kernel: one grid step per conv layer.
#   l == 0                : ConvBlock(8->256)  (input channels zero-padded to 256)
#   l odd                 : convblock1 of a ResidualBlock (ReLU)
#   l even, l > 0         : convblock2 (+ residual add + ReLU)
#   l == n_layers - 1     : additionally the fused 1x1 pconv / vconv heads
# Activation lives in VMEM scratch (x_buf holds the block input / block output,
# h_buf holds the intermediate of a residual block).
# ----------------------------------------------------------------------------
def _tower_kernel(x0_ref, mask_ref, w_ref, prm_ref, hw_ref, hprm_ref, head_ref,
                  x_buf, h_buf, *, cp, m_pad, m_valid, n_layers, roll_sign):
    l = pl.program_id(0)
    valid = mask_ref[_VALID_ROW:_VALID_ROW + 1, :]          # (1, m_pad) 0/1 f32
    inv_cnt = 1.0 / float(m_valid)

    def batchnorm(y, gamma, beta):
        # Exact training-mode BatchNorm2d stats over the m_valid real columns.
        ym = y * valid
        mean = jnp.sum(ym, axis=1, keepdims=True) * inv_cnt
        diff = y - mean
        dm = diff * valid
        var = jnp.sum(dm * dm, axis=1, keepdims=True) * inv_cnt
        return diff * (gamma * lax.rsqrt(var + BN_EPS)) + beta

    def conv3x3_bn(x_f32):
        prm = prm_ref[0]                                     # (cp, 4) f32
        bias, gamma, beta = prm[:, 0:1], prm[:, 1:2], prm[:, 2:3]
        acc = None
        for kh in range(3):
            for kw in range(3):
                t = kh * 3 + kw
                d = (kh - 1) * BOARD_W + (kw - 1)            # source column offset
                if d == 0:
                    xs = x_f32
                else:
                    shift = ((-roll_sign) * d) % m_pad       # xs[:, m] = x[:, m + d]
                    xs = pltpu.roll(x_f32, shift=shift, axis=1)
                    xs = xs * mask_ref[t:t + 1, :]           # zero cross-boundary reads
                part = jnp.dot(w_ref[t], xs.astype(jnp.bfloat16),
                               preferred_element_type=jnp.float32)
                acc = part if acc is None else acc + part
        return batchnorm(acc + bias, gamma, beta)

    @pl.when(l == 0)                                         # ConvBlock(8->256) + ReLU
    def _():
        x_buf[...] = jnp.maximum(conv3x3_bn(x0_ref[...].astype(jnp.float32)), 0.0)

    @pl.when(jnp.logical_and(l > 0, lax.rem(l, 2) == 1))     # convblock1 + ReLU
    def _():
        h_buf[...] = jnp.maximum(conv3x3_bn(x_buf[...]), 0.0)

    @pl.when(jnp.logical_and(l > 0, lax.rem(l, 2) == 0))     # convblock2 + residual + ReLU
    def _():
        x_buf[...] = jnp.maximum(conv3x3_bn(h_buf[...]) + x_buf[...], 0.0)

    @pl.when(l == n_layers - 1)                              # fused pconv/vconv (1x1) heads
    def _():
        hp = hprm_ref[...]                                   # (8, 4) f32
        hb, hg, hbe = hp[:, 0:1], hp[:, 1:2], hp[:, 2:3]
        y = jnp.dot(hw_ref[...], x_buf[...].astype(jnp.bfloat16),
                    preferred_element_type=jnp.float32) + hb
        head_ref[...] = jnp.maximum(batchnorm(y, hg, hbe), 0.0)


@functools.lru_cache(maxsize=None)
def _build_tower(cp, m_pad, m_valid, n_layers, roll_sign):
    kernel = functools.partial(_tower_kernel, cp=cp, m_pad=m_pad, m_valid=m_valid,
                               n_layers=n_layers, roll_sign=roll_sign)
    cost = pl.CostEstimate(
        flops=2 * n_layers * 9 * cp * cp * m_pad + 2 * _N_HEAD_ROWS * cp * m_pad,
        transcendentals=(n_layers + 1) * cp,
        bytes_accessed=(n_layers * 9 * cp * cp + cp * m_pad + _N_HEAD_ROWS * cp) * 2
        + (n_layers * cp * 4 + _MASK_ROWS * m_pad + _N_HEAD_ROWS * (4 + m_pad)) * 4,
    )
    return pl.pallas_call(
        kernel,
        out_shape=jax.ShapeDtypeStruct((_N_HEAD_ROWS, m_pad), jnp.float32),
        grid=(n_layers,),
        in_specs=[
            pl.BlockSpec((cp, m_pad), lambda l: (0, 0)),              # x0 (resident)
            pl.BlockSpec((_MASK_ROWS, m_pad), lambda l: (0, 0)),      # tap/valid masks
            pl.BlockSpec((9, cp, cp), lambda l: (l, 0, 0)),           # per-layer weights
            pl.BlockSpec((1, cp, 4), lambda l: (l, 0, 0)),            # bias/gamma/beta
            pl.BlockSpec((_N_HEAD_ROWS, cp), lambda l: (0, 0)),       # head conv weights
            pl.BlockSpec((_N_HEAD_ROWS, 4), lambda l: (0, 0)),        # head bias/gamma/beta
        ],
        out_specs=pl.BlockSpec((_N_HEAD_ROWS, m_pad), lambda l: (0, 0)),
        scratch_shapes=[pltpu.VMEM((cp, m_pad), jnp.float32),         # x_buf
                        pltpu.VMEM((cp, m_pad), jnp.float32)],        # h_buf
        compiler_params=pltpu.CompilerParams(dimension_semantics=("arbitrary",)),
        cost_estimate=cost,
    )


# ----------------------------------------------------------------------------
# Fused policy / value linear heads (one small pallas_call).
# ----------------------------------------------------------------------------
def _heads_kernel(pin_ref, pw_ref, pb_ref, vin_ref, vw1_ref, vb1_ref,
                  vw2_ref, vb2_ref, p_ref, v_ref):
    p_ref[...] = (jnp.dot(pin_ref[...], pw_ref[...],
                          preferred_element_type=jnp.float32) + pb_ref[...])
    h = (jnp.dot(vin_ref[...], vw1_ref[...],
                 preferred_element_type=jnp.float32) + vb1_ref[...])
    h = jnp.maximum(h, 0.0)
    v = (jnp.dot(h, vw2_ref[...], preferred_element_type=jnp.float32) + vb2_ref[...])
    v_ref[...] = jnp.tanh(v)


@functools.lru_cache(maxsize=None)
def _build_heads(b, dp_in, dp_out, dv_in, dv_hid, dv_out):
    return pl.pallas_call(
        _heads_kernel,
        out_shape=(jax.ShapeDtypeStruct((b, dp_out), jnp.float32),
                   jax.ShapeDtypeStruct((b, dv_out), jnp.float32)),
        grid=(1,),
        in_specs=[
            pl.BlockSpec((b, dp_in), lambda i: (0, 0)),
            pl.BlockSpec((dp_in, dp_out), lambda i: (0, 0)),
            pl.BlockSpec((1, dp_out), lambda i: (0, 0)),
            pl.BlockSpec((b, dv_in), lambda i: (0, 0)),
            pl.BlockSpec((dv_in, dv_hid), lambda i: (0, 0)),
            pl.BlockSpec((1, dv_hid), lambda i: (0, 0)),
            pl.BlockSpec((dv_hid, dv_out), lambda i: (0, 0)),
            pl.BlockSpec((1, dv_out), lambda i: (0, 0)),
        ],
        out_specs=(pl.BlockSpec((b, dp_out), lambda i: (0, 0)),
                   pl.BlockSpec((b, dv_out), lambda i: (0, 0))),
    )


# ----------------------------------------------------------------------------
# One-time parameter packing into kernel-ready layouts (done outside the forward).
# ----------------------------------------------------------------------------
def pack_params(params):
    _roll_sign()                            # resolve the roll convention eagerly
    cp = NUM_CHANNELS
    convs = [params["conv0"]]
    for blk in params["res"]:
        convs.append(blk[0:4])
        convs.append(blk[4:8])
    w_taps, prm_rows = [], []
    for (w, b, g, be) in convs:
        if w.shape[1] < cp:                 # conv0: zero-pad Cin 8 -> 256
            w = jnp.pad(w, ((0, 0), (0, cp - w.shape[1]), (0, 0), (0, 0)))
        # (Cout, Cin, 3, 3) -> (tap = kh*3+kw, Cout, Cin)
        w_taps.append(jnp.transpose(w, (2, 3, 0, 1)).reshape(9, cp, cp))
        prm_rows.append(jnp.stack([b, g, be, jnp.zeros_like(b)], axis=1))
    w_all = jnp.concatenate(w_taps, axis=0).astype(jnp.bfloat16)       # (19*9, 256, 256)
    prm = jnp.stack(prm_rows, axis=0).astype(jnp.float32)              # (19, 256, 4)

    pw_c, pb_c, pg_c, pbe_c = params["pconv"]                          # (2, 256, 1, 1)
    vw_c, vb_c, vg_c, vbe_c = params["vconv"]                          # (1, 256, 1, 1)
    pad = _N_HEAD_ROWS - 3
    head_w = jnp.concatenate(
        [pw_c.reshape(2, cp), vw_c.reshape(1, cp),
         jnp.zeros((pad, cp), jnp.float32)], axis=0).astype(jnp.bfloat16)
    hb = jnp.concatenate([pb_c, vb_c, jnp.zeros((pad,), jnp.float32)])
    hg = jnp.concatenate([pg_c, vg_c, jnp.zeros((pad,), jnp.float32)])
    hbe = jnp.concatenate([pbe_c, vbe_c, jnp.zeros((pad,), jnp.float32)])
    head_prm = jnp.stack([hb, hg, hbe, jnp.zeros_like(hb)], axis=1).astype(jnp.float32)

    d_p = 2 * BOARD_H * BOARD_W + 1                                    # 61
    d_v = BOARD_H * BOARD_W + 1                                        # 31
    dp_out = _round_up(NUM_ACTIONS, _LANE)                             # 640 (lane-dense)
    pw = jnp.zeros((_LANE, dp_out), jnp.float32).at[:d_p, :NUM_ACTIONS].set(
        params["plinear_w"].T)
    pb = jnp.zeros((1, dp_out), jnp.float32).at[0, :NUM_ACTIONS].set(params["plinear_b"])
    vw1 = jnp.zeros((_LANE, 256), jnp.float32).at[:d_v, :].set(params["vlin1_w"].T)
    vb1 = params["vlin1_b"].reshape(1, 256).astype(jnp.float32)
    vw2 = jnp.zeros((256, _LANE), jnp.float32).at[:, :1].set(params["vlin2_w"].T)
    vb2 = jnp.zeros((1, _LANE), jnp.float32).at[0, :1].set(params["vlin2_b"])

    return dict(emb=params["emb"], w_all=w_all, prm=prm, head_w=head_w,
                head_prm=head_prm, pw=pw, pb=pb, vw1=vw1, vb1=vb1, vw2=vw2, vb2=vb2)


# ----------------------------------------------------------------------------
# Full Network forward (Pallas path).
# ----------------------------------------------------------------------------
def _network_forward(packed, channels, clock):
    B = channels.shape[0]
    M = B * BOARD_H * BOARD_W
    m_pad = _round_up(M, _LANE)

    # Embedding gather (tiny 7x4 table) + channel-major layout, done in XLA glue.
    e = jnp.take(packed["emb"], channels, axis=0)                      # (B, 2, 6, 5, E)
    x0 = jnp.transpose(e, (1, 4, 0, 2, 3)).reshape(2 * EMBEDDING_DIM, M)
    x0 = jnp.pad(x0, ((0, NUM_CHANNELS - 2 * EMBEDDING_DIM), (0, m_pad - M)))
    x0 = x0.astype(jnp.bfloat16)

    # Precomputed 0/1 tap-validity masks + valid-column mask (constant-folded by XLA).
    cols = jnp.arange(m_pad, dtype=jnp.int32)
    sp = cols % (BOARD_H * BOARD_W)
    r, c = sp // BOARD_W, sp % BOARD_W
    rows = []
    for kh in range(3):
        for kw in range(3):
            rr, cc = r + (kh - 1), c + (kw - 1)
            rows.append((rr >= 0) & (rr < BOARD_H) & (cc >= 0) & (cc < BOARD_W))
    rows.append(cols < M)
    while len(rows) < _MASK_ROWS:
        rows.append(jnp.zeros((m_pad,), jnp.bool_))
    masks = jnp.stack(rows, axis=0).astype(jnp.float32)                # (16, m_pad)

    head = _build_tower(NUM_CHANNELS, m_pad, M, _N_CONV_LAYERS, _roll_sign())(
        x0, masks, packed["w_all"], packed["prm"], packed["head_w"], packed["head_prm"])

    hc = head[:, :M]
    px = hc[0:2].reshape(2, B, BOARD_H * BOARD_W).transpose(1, 0, 2).reshape(B, -1)
    vx = hc[2].reshape(B, BOARD_H * BOARD_W)
    p_in = jnp.concatenate([px, clock], axis=1)                        # (B, 61)
    v_in = jnp.concatenate([vx, clock], axis=1)                        # (B, 31)
    p_in = jnp.pad(p_in, ((0, 0), (0, _LANE - p_in.shape[1])))
    v_in = jnp.pad(v_in, ((0, 0), (0, _LANE - v_in.shape[1])))

    p_pad, v_pad = _build_heads(B, _LANE, packed["pw"].shape[1], _LANE,
                                packed["vw1"].shape[1], packed["vw2"].shape[1])(
        p_in, packed["pw"], packed["pb"], v_in,
        packed["vw1"], packed["vb1"], packed["vw2"], packed["vb2"])
    return p_pad[:, :NUM_ACTIONS], v_pad[:, :1]


network_forward = jax.jit(_network_forward)


# ----------------------------------------------------------------------------
# Pure-JAX f32 reference (mirrors the PyTorch module exactly).
# ----------------------------------------------------------------------------
def _ref_convblock(x, w, b, g, be, stride, padding, relu=True):
    y = lax.conv_general_dilated(
        x, w, window_strides=(stride, stride),
        padding=[(padding, padding), (padding, padding)],
        dimension_numbers=("NCHW", "OIHW", "NCHW"),
        precision=lax.Precision.HIGHEST)
    y = y + b.reshape(1, -1, 1, 1)
    mean = jnp.mean(y, axis=(0, 2, 3), keepdims=True)
    var = jnp.mean((y - mean) ** 2, axis=(0, 2, 3), keepdims=True)
    y = (y - mean) * lax.rsqrt(var + BN_EPS)
    y = y * g.reshape(1, -1, 1, 1) + be.reshape(1, -1, 1, 1)
    return jnp.maximum(y, 0.0) if relu else y


def reference_forward(params, channels, clock):
    B = channels.shape[0]
    e = jnp.take(params["emb"], channels, axis=0)
    x = jnp.transpose(e, (0, 1, 4, 2, 3)).reshape(
        B, 2 * EMBEDDING_DIM, BOARD_H, BOARD_W).astype(jnp.float32)
    x = _ref_convblock(x, *params["conv0"], 1, 1, True)
    for (w1, b1, g1, be1, w2, b2, g2, be2) in params["res"]:
        h = _ref_convblock(x, w1, b1, g1, be1, 1, 1, True)
        y = _ref_convblock(h, w2, b2, g2, be2, 1, 1, False)
        x = jnp.maximum(y + x, 0.0)
    px = _ref_convblock(x, *params["pconv"], 1, 0, True).reshape(B, -1)
    p = jnp.dot(jnp.concatenate([px, clock], axis=1), params["plinear_w"].T,
                precision=lax.Precision.HIGHEST) + params["plinear_b"]
    vx = _ref_convblock(x, *params["vconv"], 1, 0, True).reshape(B, -1)
    vh = jnp.dot(jnp.concatenate([vx, clock], axis=1), params["vlin1_w"].T,
                 precision=lax.Precision.HIGHEST) + params["vlin1_b"]
    vh = jnp.maximum(vh, 0.0)
    v = jnp.tanh(jnp.dot(vh, params["vlin2_w"].T,
                         precision=lax.Precision.HIGHEST) + params["vlin2_b"])
    return p, v


# ----------------------------------------------------------------------------
# Deterministic synthetic parameters (shapes per torch Conv2d/BatchNorm2d/Linear).
# ----------------------------------------------------------------------------
def _convblock_params(key, cin, cout, ksize):
    k1, k2, k3, k4 = jax.random.split(key, 4)
    fan = cin * ksize * ksize
    w = jax.random.normal(k1, (cout, cin, ksize, ksize), jnp.float32) / math.sqrt(fan)
    b = 0.1 * jax.random.normal(k2, (cout,), jnp.float32)
    g = 1.0 + 0.1 * jax.random.normal(k3, (cout,), jnp.float32)
    be = 0.1 * jax.random.normal(k4, (cout,), jnp.float32)
    return (w, b, g, be)


def init_params(key):
    keys = iter(jax.random.split(key, 32))
    p = {}
    p["emb"] = jax.random.normal(next(keys), (7, EMBEDDING_DIM), jnp.float32)
    p["conv0"] = _convblock_params(next(keys), 2 * EMBEDDING_DIM, NUM_CHANNELS, 3)
    res = []
    for _ in range(NUM_RES_BLOCKS):
        cb1 = _convblock_params(next(keys), NUM_CHANNELS, NUM_CHANNELS, 3)
        cb2 = _convblock_params(next(keys), NUM_CHANNELS, NUM_CHANNELS, 3)
        res.append(cb1 + cb2)
    p["res"] = res
    p["pconv"] = _convblock_params(next(keys), NUM_CHANNELS, 2, 1)
    d_p = 2 * BOARD_H * BOARD_W + 1
    p["plinear_w"] = jax.random.normal(next(keys), (NUM_ACTIONS, d_p), jnp.float32) / math.sqrt(d_p)
    p["plinear_b"] = 0.1 * jax.random.normal(next(keys), (NUM_ACTIONS,), jnp.float32)
    p["vconv"] = _convblock_params(next(keys), NUM_CHANNELS, 1, 1)
    d_v = BOARD_H * BOARD_W + 1
    p["vlin1_w"] = jax.random.normal(next(keys), (256, d_v), jnp.float32) / math.sqrt(d_v)
    p["vlin1_b"] = 0.1 * jax.random.normal(next(keys), (256,), jnp.float32)
    p["vlin2_w"] = jax.random.normal(next(keys), (1, 256), jnp.float32) / math.sqrt(256)
    p["vlin2_b"] = 0.1 * jax.random.normal(next(keys), (1,), jnp.float32)
    return p


if __name__ == "__main__":
    B = 16   # -> M = B*6*5 = 480 columns, padded to 512 lane-dense columns
    key = jax.random.PRNGKey(0)
    kp, kc, kk = jax.random.split(key, 3)
    params = init_params(kp)
    packed = pack_params(params)
    channels = jax.random.randint(kc, (B, 2, BOARD_H, BOARD_W), 0, 7, dtype=jnp.int32)
    clock = jax.random.uniform(kk, (B, 1), dtype=jnp.float32)

    p, v = network_forward(packed, channels, clock)
    p = jax.block_until_ready(p)
    v = jax.block_until_ready(v)

    p_ref, v_ref = reference_forward(params, channels, clock)

    assert p.shape == (B, NUM_ACTIONS) and v.shape == (B, 1)
    # The Pallas path feeds the MXU bf16 operands (f32 accumulation) through ~20
    # conv layers, so it deviates from the exact f32 reference at the ~1% level.
    # Structural bugs (wrong stencil orientation / BN stats / residual wiring)
    # decorrelate the outputs entirely (errors O(1)), so these bounds catch them.
    p_err = float(jnp.max(jnp.abs(p - p_ref)))
    v_err = float(jnp.max(jnp.abs(v - v_ref)))
    p_rms = float(jnp.sqrt(jnp.mean((p - p_ref) ** 2)))
    p_ref_rms = float(jnp.sqrt(jnp.mean(p_ref ** 2)))
    assert p_err < 0.5 and v_err < 0.25, (p_err, v_err)
    assert p_rms < 0.05 + 0.1 * p_ref_rms, (p_rms, p_ref_rms)
    print("KERNEL_OK")
</pallas_src>

<mosaic_0001>
module attributes {stable_mosaic.version = 11 : i64} {
  func.func @kernel(%arg0: i32, %arg1: memref<8x128xf32, #tpu.memory_space<vmem>>, %arg2: memref<8x128xf32, #tpu.memory_space<vmem>>) attributes {dimension_semantics = [#tpu.dimension_semantics<arbitrary>], iteration_bounds = array<i64: 1>, scalar_prefetch = 0 : i64, scratch_operands = 0 : i64, tpu.core_type = #tpu.core_type<tc>, window_params = [{pipeline_mode = #tpu.pipeline_mode<synchronous>, transform_indices = @transform_0, window_bounds = array<i64: 8, 128>}, {pipeline_mode = #tpu.pipeline_mode<synchronous>, transform_indices = @transform_1, window_bounds = array<i64: 8, 128>}]} {
    %c0 = arith.constant 0 : index
    %c0_0 = arith.constant 0 : index
    %0 = vector.load %arg1[%c0, %c0_0] : memref<8x128xf32, #tpu.memory_space<vmem>>, vector<8x128xf32>
    %c1_i32 = arith.constant 1 : i32
    %1 = tpu.dynamic_rotate %0 by %c1_i32 dim 1 : vector<8x128xf32>, i32 -> vector<8x128xf32>
    %c0_1 = arith.constant 0 : index
    %c0_2 = arith.constant 0 : index
    %2 = vector.load %arg2[%c0_1, %c0_2] : memref<8x128xf32, #tpu.memory_space<vmem>>, vector<8x128xf32>
    tpu.vector_store %arg2[%c0_1, %c0_2], %1 {strides = array<i32>} : memref<8x128xf32, #tpu.memory_space<vmem>>, vector<8x128xf32>,
    return
  }
  func.func @transform_0(%arg0: i32) -> (i32, i32) {
    %c0_i32 = arith.constant 0 : i32
    %c0_i32_0 = arith.constant 0 : i32
    %c0_i32_1 = arith.constant 0 : i32
    return %c0_i32, %c0_i32_0 : i32, i32
  }
  func.func @transform_1(%arg0: i32) -> (i32, i32) {
    %c0_i32 = arith.constant 0 : i32
    %c0_i32_0 = arith.constant 0 : i32
    %c0_i32_1 = arith.constant 0 : i32
    return %c0_i32, %c0_i32_0 : i32, i32
  }
}

</mosaic_0001>

<llo_original>
// kernel: tpu_custom_call.1
$region0: #{tpu_custom_call.1}
  #allocation0 [shape = 'u32[]', space=smem, size = 0x4, offset = 0x4, fixed_abs, tag = 'smem constant byte address 0x4 - core index']
  #allocation1 [shape = 'u32[72,128]{1,0:T(1,128)}', space=vmem, size = 0x9000, scoped, tag = 'internal scratch']
  %s0 = inlined_call_operand.hbm [shape: f32[8,128], index: 0, kind: input, shape index: {}]
  %s1 = inlined_call_operand.hbm [shape: f32[8,128], index: 1, kind: output, shape index: {}]
  %s2 = sld [smem:[#allocation0]]
  $region18: #{tpu_custom_call.1} parent=0
    _
  %s4 = ssub.s32 1, %s2
  %s5 = scalar_select 0, %s4, %s2
  $region1: #{tpu_custom_call.1} parent=0
    #allocation2 [shape = 'u8[4096]{0}', space=vmem, size = 0x1000, scoped, tag = 'input window, operand 0, single buffered']
    #allocation3 [shape = 's32[1]{0}', space=sflag, size = 0x4, scoped, tag = 'scoped memory for tpu_custom_call.1']
    #allocation4 [shape = 's32[1]{0}', space=sflag, size = 0x4, scoped, tag = 'scoped memory for tpu_custom_call.1']
    #allocation5 [shape = 'u8[4096]{0}', space=vmem, size = 0x1000, scoped, tag = 'output window, operand 0, single buffered']
    %6 = vsyncpa [#allocation3], 0
    %7 = vsyncpa [#allocation4], 0
    // Predicated region
    $region2: #{tpu_custom_call.1} parent=1 // pred_check
      _
    $region3: #{tpu_custom_call.1} parent=1 // pred_check_branch
      %9 = sbr.rel (0) target = $region5
    $region4: #{tpu_custom_call.1} parent=1 // pred_region
      %11 = vsyncadd [#allocation3], 0
      %s13 = sshll.u32 %s0, 4
      %s14 = int_to_ptr.hbm [resolvable:$true] %s13
      %s15 = sshll.u32 [#allocation2], 4
      %s16 = int_to_ptr.vmem [resolvable:$true] %s15
      %18 = dma.hbm_to_vmem [thread:$0]  %s14, 128, %s16, [#allocation3]
    $region5: #{tpu_custom_call.1} parent=1 // pred_fallthru
      _
    // Predicated region
    $region6: #{tpu_custom_call.1} parent=1 // pred_check
      _
    $region7: #{tpu_custom_call.1} parent=1 // pred_check_branch
      %20 = sbr.rel (0) target = $region9
    $region8: #{tpu_custom_call.1} parent=1 // pred_region
      %22 = dma.done [#allocation3], 128
    $region9: #{tpu_custom_call.1} parent=1 // pred_fallthru
      _
    %v23 = vld [vmem:[#allocation2] sm:$0xff]
    %24 = vrot.lane.b32.xlu0 %v23, 1
    %v25 = vpop.permute.xlu0 %24
    %26 = vst [vmem:[#allocation5] sm:$0xff] %v25
    // Predicated region
    $region10: #{tpu_custom_call.1} parent=1 // pred_check
      _
    $region11: #{tpu_custom_call.1} parent=1 // pred_check_branch
      %28 = sbr.rel (0) target = $region13
    $region12: #{tpu_custom_call.1} parent=1 // pred_region
      %30 = vsyncadd [#allocation4], 0
      %s32 = sshll.u32 [#allocation5], 4
      %s33 = int_to_ptr.vmem [resolvable:$true] %s32
      %s34 = sshll.u32 %s1, 4
      %s35 = int_to_ptr.hbm [resolvable:$true] %s34
      %37 = dma.vmem_to_hbm [thread:$0]  %s33, 128, %s35, [#allocation4]
    $region13: #{tpu_custom_call.1} parent=1 // pred_fallthru
      _
    // Predicated region
    $region14: #{tpu_custom_call.1} parent=1 // pred_check
      _
    $region15: #{tpu_custom_call.1} parent=1 // pred_check_branch
      %39 = sbr.rel (0) target = $region17
    $region16: #{tpu_custom_call.1} parent=1 // pred_region
      %41 = dma.done [#allocation4], 128
    $region17: #{tpu_custom_call.1} parent=1 // pred_fallthru
      _
    %42 = vsyncpa [#allocation3], 1
    %43 = vsyncpa [#allocation4], 1

</llo_original>
